<compile_context>
chip_gen: v7x
topology: tpu7x:2x2x1
jax: 0.10.0
libtpu: 0.0.40
codegen_flags: <defaults>
</compile_context>

<pallas_src>
import functools

import jax
import jax.numpy as jnp
from jax.experimental import pallas as pl
from jax.experimental.pallas import tpu as pltpu

_MIB = 1 << 20


def _round_up(x: int, m: int) -> int:
    return (x + m - 1) // m * m


def _ce_kernel(logits_ref, labels_ref, col_ids_ref, out_ref, *,
               tile_n, num_rows, num_classes):
    """One row tile -> a single f32 partial sum of per-row cross entropies."""
    i = pl.program_id(0)

    logits = logits_ref[...].astype(jnp.float32)        # (tile_n, C)
    labels = labels_ref[...]                            # (tile_n, 1) int32
    col_ids = col_ids_ref[...]                          # (1, C) int32, resident

    # Numerically stable log-softmax pieces, relative to the row max.
    row_max = jnp.max(logits, axis=-1, keepdims=True)    # (tile_n, 1)
    shifted = logits - row_max                           # (tile_n, C)
    lse = jnp.log(jnp.sum(jnp.exp(shifted), axis=-1, keepdims=True))

    # Target logit via one-hot select (no dynamic gather on TPU), fused onto the
    # already-shifted values so loss = lse - tgt_shifted directly.
    tgt = jnp.sum(jnp.where(col_ids == labels, shifted, 0.0),
                  axis=-1, keepdims=True)                # (tile_n, 1)

    # Mask: rows past the end of the (possibly partial) tail block, plus rows
    # whose label is ignored (<0) or out of range.  Garbage in the out-of-bounds
    # part of the block (possibly inf/nan) is select-masked, never accumulated.
    row_ids = jax.lax.broadcasted_iota(jnp.int32, (tile_n, 1), 0)
    in_bounds = (i * tile_n + row_ids) < num_rows
    valid = in_bounds & (labels >= 0) & (labels < num_classes)

    per_row = jnp.where(valid, lse - tgt, 0.0)           # (tile_n, 1)
    out_ref[...] = jnp.sum(per_row, axis=0, keepdims=True).reshape(1, 1, 1)


def cross_entropy_loss(logits: jax.Array, labels: jax.Array,
                       tile_n: int | None = None,
                       stream_vmem_budget: int = 16 * _MIB):
    """Equivalent of CrossEntropyLoss.forward; returns {'loss': scalar}."""
    n, c = logits.shape
    itemsize = jnp.dtype(logits.dtype).itemsize
    sub = 16 if itemsize < 4 else 8          # sublane quantum (bf16 packs rows)
    c_pad = _round_up(c, 128)                # lane-padded class width in VMEM

    # Per-row VMEM bytes of the double-buffered streaming inputs:
    #   logits  : c_pad * itemsize  (lane-padded)
    #   labels  : 128 * 4           (1 lane padded to 128)
    per_row_bytes = 2 * (c_pad * itemsize + 128 * 4)
    if tile_n is None:
        tile_n = stream_vmem_budget // per_row_bytes
        tile_n = int(min(max(tile_n, sub), 8192))
    tile_n = int(max(sub, (tile_n // sub) * sub))
    tile_n = min(tile_n, _round_up(n, sub))              # don't over-size tiny batches
    num_tiles = (n + tile_n - 1) // tile_n

    labels_i = labels.astype(jnp.int32).reshape(n)
    labels2d = labels_i.reshape(n, 1)
    col_ids = jnp.arange(c, dtype=jnp.int32).reshape(1, c)

    kernel = functools.partial(_ce_kernel, tile_n=tile_n,
                               num_rows=n, num_classes=c)

    # VMEM accounting with lane/sublane padding (double buffers) + slack.
    vmem_need = (2 * tile_n * c_pad * itemsize        # logits stream
                 + 2 * tile_n * 128 * 4               # labels stream (lane-padded)
                 + 2 * 8 * c_pad * 4                  # resident col_ids
                 + 2 * 8 * 128 * 4                    # per-tile partial-sum output
                 + 2 * _MIB)                          # slack
    # Explicit limit: v5e's scoped default is only 16 MiB; cap at 48 MiB to keep
    # headroom under v7x's 64 MiB physical VMEM.
    vmem_limit = int(min(max(vmem_need, 16 * _MIB), 48 * _MIB))

    cost = pl.CostEstimate(
        flops=6 * n * c,
        transcendentals=n * c,
        bytes_accessed=n * c * itemsize + n * 4 + num_tiles * 4 + c * 4,
    )

    partial_sums = pl.pallas_call(
        kernel,
        out_shape=jax.ShapeDtypeStruct((num_tiles, 1, 1), jnp.float32),
        grid_spec=pltpu.PrefetchScalarGridSpec(
            num_scalar_prefetch=0,
            grid=(num_tiles,),
            in_specs=[
                # Big row tile of logits, pipelined over the grid (unpadded;
                # the tail block may be partial and is masked in-kernel).
                pl.BlockSpec((tile_n, c), lambda i: (i, 0)),
                # Per-tile labels slice (tiny DMA each step).
                pl.BlockSpec((tile_n, 1), lambda i: (i, 0)),
                # Class-index row, resident (constant index_map -> single DMA).
                pl.BlockSpec((1, c), lambda i: (0, 0)),
            ],
            out_specs=pl.BlockSpec((1, 1, 1), lambda i: (i, 0, 0)),
        ),
        compiler_params=pltpu.CompilerParams(
            # Each step writes its own partial-sum block -> no cross-step state,
            # safe to shard across both TensorCores on v7x.
            dimension_semantics=("parallel",),
            vmem_limit_bytes=vmem_limit,
        ),
        cost_estimate=cost,
    )(logits, labels2d, col_ids)

    # Final mean in plain JAX: num_tiles partial sums over the count of valid
    # (non-ignored, in-range) labels -- matches nn.CrossEntropyLoss(mean).
    valid = (labels_i >= 0) & (labels_i < c)
    count = jnp.sum(valid.astype(jnp.float32))
    loss = jnp.sum(partial_sums) / count
    return {"loss": loss}


def _reference_ce(logits, labels):
    logp = jax.nn.log_softmax(logits.astype(jnp.float32), axis=-1)
    return -jnp.mean(jnp.take_along_axis(logp, labels[:, None], axis=-1))


if __name__ == "__main__":
    key = jax.random.PRNGKey(0)
    k1, k2, k3, k4, k5, k6 = jax.random.split(key, 6)

    # Primary check: batch of 16 samples, 32 classes (f32).
    N, C = 16, 32
    logits = jax.random.normal(k1, (N, C), dtype=jnp.float32)
    labels = jax.random.randint(k2, (N,), 0, C, dtype=jnp.int32)
    loss = jax.block_until_ready(cross_entropy_loss(logits, labels)["loss"])
    ref = _reference_ce(logits, labels)
    assert jnp.allclose(loss, ref, rtol=1e-5, atol=1e-5), (loss, ref)

    # Ragged batch (N not a multiple of the row tile / sublane quantum)
    # exercises the partial tail block + in-kernel row masking.
    N2, C2 = 13, 40
    logits2 = jax.random.normal(k3, (N2, C2), dtype=jnp.float32)
    labels2 = jax.random.randint(k4, (N2,), 0, C2, dtype=jnp.int32)
    loss2 = jax.block_until_ready(cross_entropy_loss(logits2, labels2)["loss"])
    ref2 = _reference_ce(logits2, labels2)
    assert jnp.allclose(loss2, ref2, rtol=1e-5, atol=1e-5), (loss2, ref2)

    # bf16 logits (sublane quantum 16, in-kernel f32 upcast).
    N3, C3 = 10, 32
    logits3 = jax.random.normal(k5, (N3, C3), dtype=jnp.bfloat16)
    labels3 = jax.random.randint(k6, (N3,), 0, C3, dtype=jnp.int32)
    loss3 = jax.block_until_ready(cross_entropy_loss(logits3, labels3)["loss"])
    ref3 = _reference_ce(logits3, labels3)
    assert jnp.allclose(loss3, ref3, rtol=1e-4, atol=1e-4), (loss3, ref3)

    print("KERNEL_OK")
</pallas_src>

<mosaic_0001>
module attributes {stable_mosaic.version = 11 : i64} {
  func.func @_ce_kernel(%arg0: i32, %arg1: memref<16x32xf32, #tpu.memory_space<vmem>>, %arg2: memref<16x1xi32, #tpu.memory_space<vmem>>, %arg3: memref<1x32xi32, #tpu.memory_space<vmem>>, %arg4: memref<1x1x1xf32, #tpu.memory_space<vmem>>) attributes {dimension_semantics = [#tpu.dimension_semantics<parallel>], iteration_bounds = array<i64: 1>, scalar_prefetch = 0 : i64, scratch_operands = 0 : i64, tpu.core_type = #tpu.core_type<tc>, window_params = [{transform_indices = @transform_0, window_bounds = array<i64: 16, 32>}, {transform_indices = @transform_1, window_bounds = array<i64: 16, 1>}, {pipeline_mode = #tpu.pipeline_mode<synchronous>, transform_indices = @transform_2, window_bounds = array<i64: 1, 32>}, {transform_indices = @transform_3, window_bounds = array<i64: 1, 1, 1>}]} {
    %c0 = arith.constant 0 : index
    %c0_0 = arith.constant 0 : index
    %0 = vector.load %arg1[%c0, %c0_0] : memref<16x32xf32, #tpu.memory_space<vmem>>, vector<16x32xf32>
    %c0_1 = arith.constant 0 : index
    %c0_2 = arith.constant 0 : index
    %1 = vector.load %arg2[%c0_1, %c0_2] : memref<16x1xi32, #tpu.memory_space<vmem>>, vector<16x1xi32>
    %c0_3 = arith.constant 0 : index
    %c0_4 = arith.constant 0 : index
    %2 = vector.load %arg3[%c0_3, %c0_4] : memref<1x32xi32, #tpu.memory_space<vmem>>, vector<1x32xi32>
    %cst = arith.constant dense<0xFF800000> : vector<16xf32>
    %3 = vector.multi_reduction <maximumf>, %0, %cst [1] : vector<16x32xf32> to vector<16xf32>
    %4 = vector.shape_cast %3 : vector<16xf32> to vector<16x1xf32>
    %5 = vector.broadcast %4 : vector<16x1xf32> to vector<16x32xf32>
    %6 = arith.subf %0, %5 : vector<16x32xf32>
    %7 = math.exp %6 : vector<16x32xf32>
    %cst_5 = arith.constant dense<0.000000e+00> : vector<16xf32>
    %8 = vector.multi_reduction <add>, %7, %cst_5 [1] : vector<16x32xf32> to vector<16xf32>
    %9 = vector.shape_cast %8 : vector<16xf32> to vector<16x1xf32>
    %10 = math.log %9 : vector<16x1xf32>
    %11 = vector.broadcast %2 : vector<1x32xi32> to vector<16x32xi32>
    %12 = vector.broadcast %1 : vector<16x1xi32> to vector<16x32xi32>
    %13 = arith.cmpi eq, %11, %12 : vector<16x32xi32>
    %cst_6 = arith.constant 0.000000e+00 : f32
    %14 = vector.broadcast %cst_6 : f32 to vector<16x32xf32>
    %15 = arith.select %13, %6, %14 : vector<16x32xi1>, vector<16x32xf32>
    %cst_7 = arith.constant dense<0.000000e+00> : vector<16xf32>
    %16 = vector.multi_reduction <add>, %15, %cst_7 [1] : vector<16x32xf32> to vector<16xf32>
    %17 = vector.shape_cast %16 : vector<16xf32> to vector<16x1xf32>
    %18 = tpu.iota {dimensions = array<i32: 0>} : vector<16x1xi32>
    %c16_i32 = arith.constant 16 : i32
    %19 = arith.muli %arg0, %c16_i32 : i32
    %20 = vector.broadcast %19 : i32 to vector<16x1xi32>
    %21 = arith.addi %20, %18 : vector<16x1xi32>
    %c16_i32_8 = arith.constant 16 : i32
    %22 = vector.broadcast %c16_i32_8 : i32 to vector<16x1xi32>
    %23 = arith.cmpi slt, %21, %22 : vector<16x1xi32>
    %c0_i32 = arith.constant 0 : i32
    %24 = vector.broadcast %c0_i32 : i32 to vector<16x1xi32>
    %25 = arith.cmpi sge, %1, %24 : vector<16x1xi32>
    %26 = arith.andi %23, %25 : vector<16x1xi1>
    %c32_i32 = arith.constant 32 : i32
    %27 = vector.broadcast %c32_i32 : i32 to vector<16x1xi32>
    %28 = arith.cmpi slt, %1, %27 : vector<16x1xi32>
    %29 = arith.andi %26, %28 : vector<16x1xi1>
    %30 = arith.subf %10, %17 : vector<16x1xf32>
    %cst_9 = arith.constant 0.000000e+00 : f32
    %31 = vector.broadcast %cst_9 : f32 to vector<16x1xf32>
    %32 = arith.select %29, %30, %31 : vector<16x1xi1>, vector<16x1xf32>
    %cst_10 = arith.constant dense<0.000000e+00> : vector<1xf32>
    %33 = vector.multi_reduction <add>, %32, %cst_10 [0] : vector<16x1xf32> to vector<1xf32>
    %34 = vector.shape_cast %33 : vector<1xf32> to vector<1x1xf32>
    %35 = vector.shape_cast %34 : vector<1x1xf32> to vector<1x1x1xf32>
    %c0_11 = arith.constant 0 : index
    %c0_12 = arith.constant 0 : index
    %c0_13 = arith.constant 0 : index
    %36 = vector.load %arg4[%c0_11, %c0_12, %c0_13] : memref<1x1x1xf32, #tpu.memory_space<vmem>>, vector<1x1x1xf32>
    tpu.vector_store %arg4[%c0_11, %c0_12, %c0_13], %35 {strides = array<i32>} : memref<1x1x1xf32, #tpu.memory_space<vmem>>, vector<1x1x1xf32>,
    return
  }
  func.func @transform_0(%arg0: i32) -> (i32, i32) {
    %c0_i32 = arith.constant 0 : i32
    %c0_i32_0 = arith.constant 0 : i32
    return %arg0, %c0_i32 : i32, i32
  }
  func.func @transform_1(%arg0: i32) -> (i32, i32) {
    %c0_i32 = arith.constant 0 : i32
    %c0_i32_0 = arith.constant 0 : i32
    return %arg0, %c0_i32 : i32, i32
  }
  func.func @transform_2(%arg0: i32) -> (i32, i32) {
    %c0_i32 = arith.constant 0 : i32
    %c0_i32_0 = arith.constant 0 : i32
    %c0_i32_1 = arith.constant 0 : i32
    return %c0_i32, %c0_i32_0 : i32, i32
  }
  func.func @transform_3(%arg0: i32) -> (i32, i32, i32) {
    %c0_i32 = arith.constant 0 : i32
    %c0_i32_0 = arith.constant 0 : i32
    %c0_i32_1 = arith.constant 0 : i32
    return %arg0, %c0_i32, %c0_i32_0 : i32, i32, i32
  }
}

</mosaic_0001>

<llo_original>
// kernel: tpu_custom_call.1
$region0: #{tpu_custom_call.1}
  #allocation0 [shape = 'u32[]', space=smem, size = 0x4, offset = 0x4, fixed_abs, tag = 'smem constant byte address 0x4 - core index']
  #allocation1 [shape = 'u32[144,128]{1,0:T(1,128)}', space=vmem, size = 0x12000, scoped, tag = 'internal scratch']
  %s0 = inlined_call_operand.vmem [shape: f32[16,32], index: 0, kind: input, shape index: {}]
  %s1 = inlined_call_operand.vmem [shape: s32[16,1], index: 1, kind: input, shape index: {}]
  %s2 = inlined_call_operand.vmem [shape: s32[1,32], index: 2, kind: input, shape index: {}]
  %s3 = inlined_call_operand.hbm [shape: f32[1,1,1], index: 3, kind: output, shape index: {}]
  %s4 = sld [smem:[#allocation0]]
  $region22: #{tpu_custom_call.1} parent=0
    _
  %s6 = ssub.s32 1, %s4
  %s7 = scalar_select 0, %s6, %s4
  $region1: #{tpu_custom_call.1} parent=0
    #allocation2 [shape = 'u8[512]{0}', space=vmem, size = 0x400, scoped, tag = 'output window, operand 0, single buffered']
    #allocation3 [shape = 's32[1]{0}', space=sflag, size = 0x4, scoped, tag = 'scoped memory for tpu_custom_call.1']
    %8 = vsyncpa [#allocation3], 0
    // Predicated region
    $region2: #{tpu_custom_call.1} parent=1 // pred_check
      _
    $region3: #{tpu_custom_call.1} parent=1 // pred_check_branch
      %10 = sbr.rel (0) target = $region5
    $region4: #{tpu_custom_call.1} parent=1 // pred_region
      _
    $region5: #{tpu_custom_call.1} parent=1 // pred_fallthru
      _
    // Predicated region
    $region6: #{tpu_custom_call.1} parent=1 // pred_check
      _
    $region7: #{tpu_custom_call.1} parent=1 // pred_check_branch
      %12 = sbr.rel (0) target = $region9
    $region8: #{tpu_custom_call.1} parent=1 // pred_region
      _
    $region9: #{tpu_custom_call.1} parent=1 // pred_fallthru
      _
    // Predicated region
    $region10: #{tpu_custom_call.1} parent=1 // pred_check
      _
    $region11: #{tpu_custom_call.1} parent=1 // pred_check_branch
      %14 = sbr.rel (0) target = $region13
    $region12: #{tpu_custom_call.1} parent=1 // pred_region
      _
    $region13: #{tpu_custom_call.1} parent=1 // pred_fallthru
      _
    %v15 = vld [vmem:[%s0] sm:$0xff]
    %v16 = vld [vmem:[%s0 + $0x8] sm:$0xff]
    %v17 = vld [vmem:[%s1] sm:$0xff]
    %v18 = vld [vmem:[%s1 + $0x8] sm:$0xff]
    %v19 = vld [vmem:[%s2] sm:$0x1]
    %vm20 = vcmask 261120
    %v21 = vsel %vm20, %v15, -inf
    %22 = vmax.xlane.f32.xlu0 %v21
    %v23 = vpop.xlane.xlu0 %22
    %v24 = vsel %vm20, %v16, -inf
    %25 = vmax.xlane.f32.xlu0 %v24
    %v26 = vpop.xlane.xlu0 %25
    %v27 = vsub.f32 %v15, %v23
    %v28 = vsub.f32 %v16, %v26
    %v29 = vmul.f32 %v27, 1.442695
    %v30 = vpow.pop %v29
    %v31 = vmul.f32 %v28, 1.442695
    %v32 = vpow.pop %v31
    %v33 = vsel %vm20, %v30, 0.0
    %34 = vadd.xlane.f32.xlu0 %v33
    %v35 = vpop.xlane.xlu0 %34
    %v36 = vsel %vm20, %v32, 0.0
    %37 = vadd.xlane.f32.xlu0 %v36
    %v38 = vpop.xlane.xlu0 %37
    %v39 = vlog2.pop %v35
    %v40 = vmul.f32 %v39, 0.6931472
    %v41 = vlog2.pop %v38
    %v42 = vmul.f32 %v41, 0.6931472
    %v43 = vlaneseq
    %v44 = vshrl.u32 %v43, 7
    %v45 = vsub.s32 0, %v44
    %v46 = vrot.slane %v19, %v45
    %47 = vset.pattern.permute.xlu0 0
    %48 = vperm.xlu0 %47, %v17
    %v49 = vpop.permute.xlu0 %48
    %50 = vset.pattern.permute.xlu0 0
    %51 = vperm.xlu0 %50, %v18
    %v52 = vpop.permute.xlu0 %51
    %vm53 = vcmp.eq.s32.totalorder %v46, %v49
    %vm54 = vcmp.eq.s32.totalorder %v46, %v52
    %v55 = vsel %vm53, %v27, 0.0
    %v56 = vsel %vm54, %v28, 0.0
    %v57 = vsel %vm20, %v55, 0.0
    %58 = vadd.xlane.f32.xlu0 %v57
    %v59 = vpop.xlane.xlu0 %58
    %v60 = vsel %vm20, %v56, 0.0
    %61 = vadd.xlane.f32.xlu0 %v60
    %v62 = vpop.xlane.xlu0 %61
    %v63 = vlaneseq
    %v64 = vshrl.u32 %v63, 7
    %v65 = vadd.s32 %v64, 8
    %s66 = smul.u32 0, 16
    %v67 = vstv %s66
    %v68 = vadd.s32 %v67, %v64
    %v69 = vadd.s32 %v67, %v65
    %vm70 = vcmp.lt.s32.totalorder %v68, 16
    %vm71 = vcmp.lt.s32.totalorder %v69, 16
    %vm72 = vcmp.ge.s32.totalorder %v17, 0
    %vm73 = vcmp.ge.s32.totalorder %v18, 0
    %vm74 = vmand %vm70, %vm72
    %vm75 = vmand %vm71, %vm73
    %vm76 = vcmp.lt.s32.totalorder %v17, 32
    %vm77 = vcmp.lt.s32.totalorder %v18, 32
    %vm78 = vmand %vm74, %vm76
    %vm79 = vmand %vm75, %vm77
    %v80 = vsub.f32 %v40, %v59
    %v81 = vsub.f32 %v42, %v62
    %v82 = vsel %vm78, %v80, 0.0
    %v83 = vsel %vm79, %v81, 0.0
    %vm84 = vcmask 7168
    %v85 = vsel %vm84, %v82, 0.0
    %v86 = vsel %vm84, %v83, 0.0
    %v87 = vadd.f32 %v85, %v86
    %v88 = vrot.slane %v87, 4
    %v89 = vadd.f32 %v87, %v88
    %v90 = vrot.slane %v89, 2
    %v91 = vadd.f32 %v89, %v90
    %v92 = vrot.slane %v91, 1
    %v93 = vadd.f32 %v91, %v92
    %vm94 = vcmask 0
    %95 = vst.msk [vmem:[#allocation2] sm:$0x1] %vm94, %v93
    // Predicated region
    $region14: #{tpu_custom_call.1} parent=1 // pred_check
      _
    $region15: #{tpu_custom_call.1} parent=1 // pred_check_branch
      %97 = sbr.rel (0) target = $region17
    $region16: #{tpu_custom_call.1} parent=1 // pred_region
      %s99 = ssub.s32 16, 16
      %100 = vsyncadd [#allocation3], %s99
      %s102 = sshll.u32 [#allocation2], 4
      %s103 = int_to_ptr.vmem [resolvable:$true] %s102
      %105 = dma.vmem_to_hbm [thread:$0]  %s103, 16, %s3, [#allocation3]
    $region17: #{tpu_custom_call.1} parent=1 // pred_fallthru
      _
    // Predicated region
    $region18: #{tpu_custom_call.1} parent=1 // pred_check
      _
    $region19: #{tpu_custom_call.1} parent=1 // pred_check_branch
      %107 = sbr.rel (0) target = $region21
    $region20: #{tpu_custom_call.1} parent=1 // pred_region
      %108 = dma.done [#allocation3], 16
    $region21: #{tpu_custom_call.1} parent=1 // pred_fallthru
      _
    %109 = vsyncpa [#allocation3], 1

</llo_original>
